<compile_context>
chip_gen: v7x
topology: tpu7x:2x2x1
jax: 0.10.0
libtpu: 0.0.40
codegen_flags: <defaults>
</compile_context>

<pallas_src>
import jax
import jax.numpy as jnp
from jax.experimental import pallas as pl
from jax.experimental.pallas import tpu as pltpu

STEP_SIZE = 0.01
_LANE_CANDIDATES = (4096, 2048, 1024, 512, 256, 128)
_TARGET_BLOCK_BYTES = 2 * 1024 * 1024  # ~2 MiB per block (x2 buffers x in/out)


def _quantize_relu_kernel(x_ref, o_ref):
    x = x_ref[...]
    xf = x.astype(jnp.float32)
    step = jnp.float32(STEP_SIZE)
    q = jnp.floor(xf / step) * step
    # For x >= 0, q >= 0 already; for x < 0 write an explicit +0.0.
    out = jnp.where(xf >= 0.0, q, jnp.float32(0.0))
    o_ref[...] = out.astype(o_ref.dtype)


def quantize_relu(x: jax.Array, step_size: float = STEP_SIZE) -> jax.Array:
    assert step_size == STEP_SIZE, "step_size baked into kernel constant"
    orig_shape = x.shape
    orig_dtype = x.dtype
    total = x.size
    itemsize = jnp.dtype(orig_dtype).itemsize

    # Pick the widest lane dim (multiple of 128) that divides the element
    # count, so we reshape in place with no padding copy for typical shapes.
    lanes = None
    for cand in _LANE_CANDIDATES:
        if total % cand == 0:
            lanes = cand
            break

    flat = x.reshape(-1)
    if lanes is None:
        # Rare ragged case: minimal pad to a multiple of 128 lanes.
        lanes = 128
        padded_total = pl.cdiv(total, lanes) * lanes
        flat = jnp.pad(flat, (0, padded_total - total))

    rows = flat.size // lanes
    x2d = flat.reshape(rows, lanes)

    # Block sizing: ~2 MiB, rows a multiple of 8 (sublane) unless the block
    # covers the whole row extent (full-extent blocks are always legal).
    block_rows = max(8, _TARGET_BLOCK_BYTES // (lanes * itemsize))
    block_rows = (block_rows // 8) * 8
    if block_rows >= rows:
        block_rows = rows
    grid = (pl.cdiv(rows, block_rows),)

    out2d = pl.pallas_call(
        _quantize_relu_kernel,
        out_shape=jax.ShapeDtypeStruct((rows, lanes), orig_dtype),
        grid_spec=pltpu.PrefetchScalarGridSpec(
            num_scalar_prefetch=0,
            grid=grid,
            in_specs=[pl.BlockSpec((block_rows, lanes), lambda i: (i, 0))],
            out_specs=pl.BlockSpec((block_rows, lanes), lambda i: (i, 0)),
        ),
        compiler_params=pltpu.CompilerParams(
            dimension_semantics=("parallel",),
        ),
    )(x2d)

    if out2d.size != total:
        # Only taken on the ragged/padded path.
        return out2d.reshape(-1)[:total].reshape(orig_shape)
    return out2d.reshape(orig_shape)


def _reference(x, step_size=STEP_SIZE):
    mask = (x >= 0).astype(x.dtype)
    out = jnp.floor(x / step_size) * step_size
    out = out * mask
    return jnp.abs(out)


if __name__ == "__main__":
    key = jax.random.PRNGKey(0)
    # Small NCHW input consistent with a conv-style activation tensor.
    x = jax.random.normal(key, (2, 4, 16, 16), dtype=jnp.float32)

    out = quantize_relu(x)
    out = jax.block_until_ready(out)

    ref = _reference(x)
    assert out.shape == x.shape
    assert out.dtype == x.dtype
    assert jnp.allclose(out, ref, atol=1e-6), "mismatch vs reference"

    print("KERNEL_OK")
</pallas_src>

<mosaic_0001>
module attributes {stable_mosaic.version = 11 : i64} {
  func.func @_quantize_relu_kernel(%arg0: i32, %arg1: memref<1x2048xf32, #tpu.memory_space<vmem>>, %arg2: memref<1x2048xf32, #tpu.memory_space<vmem>>) attributes {dimension_semantics = [#tpu.dimension_semantics<parallel>], iteration_bounds = array<i64: 1>, scalar_prefetch = 0 : i64, scratch_operands = 0 : i64, tpu.core_type = #tpu.core_type<tc>, window_params = [{transform_indices = @transform_0, window_bounds = array<i64: 1, 2048>}, {transform_indices = @transform_1, window_bounds = array<i64: 1, 2048>}]} {
    %c0 = arith.constant 0 : index
    %c0_0 = arith.constant 0 : index
    %0 = vector.load %arg1[%c0, %c0_0] : memref<1x2048xf32, #tpu.memory_space<vmem>>, vector<1x2048xf32>
    %cst = arith.constant 0.00999999977 : f32
    %1 = vector.broadcast %cst : f32 to vector<1x2048xf32>
    %2 = arith.divf %0, %1 : vector<1x2048xf32>
    %3 = math.floor %2 : vector<1x2048xf32>
    %cst_1 = arith.constant 0.00999999977 : f32
    %4 = vector.broadcast %cst_1 : f32 to vector<1x2048xf32>
    %5 = arith.mulf %3, %4 : vector<1x2048xf32>
    %cst_2 = arith.constant 0.000000e+00 : f32
    %6 = vector.broadcast %cst_2 : f32 to vector<1x2048xf32>
    %7 = arith.cmpf oge, %0, %6 : vector<1x2048xf32>
    %cst_3 = arith.constant 0.000000e+00 : f32
    %8 = vector.broadcast %cst_3 : f32 to vector<1x2048xf32>
    %9 = arith.select %7, %5, %8 : vector<1x2048xi1>, vector<1x2048xf32>
    %c0_4 = arith.constant 0 : index
    %c0_5 = arith.constant 0 : index
    %10 = vector.load %arg2[%c0_4, %c0_5] : memref<1x2048xf32, #tpu.memory_space<vmem>>, vector<1x2048xf32>
    tpu.vector_store %arg2[%c0_4, %c0_5], %9 {strides = array<i32>} : memref<1x2048xf32, #tpu.memory_space<vmem>>, vector<1x2048xf32>,
    return
  }
  func.func @transform_0(%arg0: i32) -> (i32, i32) {
    %c0_i32 = arith.constant 0 : i32
    %c0_i32_0 = arith.constant 0 : i32
    return %arg0, %c0_i32 : i32, i32
  }
  func.func @transform_1(%arg0: i32) -> (i32, i32) {
    %c0_i32 = arith.constant 0 : i32
    %c0_i32_0 = arith.constant 0 : i32
    return %arg0, %c0_i32 : i32, i32
  }
}

</mosaic_0001>

<llo_original>
// kernel: tpu_custom_call.1
$region0: #{tpu_custom_call.1}
  #allocation0 [shape = 'u32[]', space=smem, size = 0x4, offset = 0x4, fixed_abs, tag = 'smem constant byte address 0x4 - core index']
  #allocation1 [shape = 'u32[144,128]{1,0:T(1,128)}', space=vmem, size = 0x12000, scoped, tag = 'internal scratch']
  %s0 = inlined_call_operand.hbm [shape: f32[1,2048], index: 0, kind: input, shape index: {}]
  %s1 = inlined_call_operand.hbm [shape: f32[1,2048], index: 1, kind: output, shape index: {}]
  %s2 = sld [smem:[#allocation0]]
  $region18: #{tpu_custom_call.1} parent=0
    _
  %s4 = ssub.s32 1, %s2
  %s5 = scalar_select 0, %s4, %s2
  $region1: #{tpu_custom_call.1} parent=0
    #allocation2 [shape = 'u8[8192]{0}', space=vmem, size = 0x2000, scoped, tag = 'input window, operand 0, single buffered']
    #allocation3 [shape = 's32[1]{0}', space=sflag, size = 0x4, scoped, tag = 'scoped memory for tpu_custom_call.1']
    #allocation4 [shape = 's32[1]{0}', space=sflag, size = 0x4, scoped, tag = 'scoped memory for tpu_custom_call.1']
    #allocation5 [shape = 'u8[8192]{0}', space=vmem, size = 0x2000, scoped, tag = 'output window, operand 0, single buffered']
    %6 = vsyncpa [#allocation3], 0
    %7 = vsyncpa [#allocation4], 0
    // Predicated region
    $region2: #{tpu_custom_call.1} parent=1 // pred_check
      _
    $region3: #{tpu_custom_call.1} parent=1 // pred_check_branch
      %9 = sbr.rel (0) target = $region5
    $region4: #{tpu_custom_call.1} parent=1 // pred_region
      %s11 = ssub.s32 256, 256
      %12 = vsyncadd [#allocation3], %s11
      %s14 = sshll.u32 [#allocation2], 4
      %s15 = int_to_ptr.vmem [resolvable:$true] %s14
      %17 = dma.hbm_to_vmem [thread:$0]  %s0, 256, %s15, [#allocation3]
    $region5: #{tpu_custom_call.1} parent=1 // pred_fallthru
      _
    // Predicated region
    $region6: #{tpu_custom_call.1} parent=1 // pred_check
      _
    $region7: #{tpu_custom_call.1} parent=1 // pred_check_branch
      %19 = sbr.rel (0) target = $region9
    $region8: #{tpu_custom_call.1} parent=1 // pred_region
      %20 = dma.done [#allocation3], 256
    $region9: #{tpu_custom_call.1} parent=1 // pred_fallthru
      _
    %v21 = vld [vmem:[#allocation2] sm:$0xff]
    %v22 = vld [vmem:[#allocation2 + $0x8] sm:$0xff]
    %v23 = vrcp.pop 0.01
    %v24 = vmul.f32 %v21, %v23
    %v25 = vmul.f32 %v22, %v23
    %v26 = vfloor.f32 %v24
    %v27 = vfloor.f32 %v25
    %v28 = vmul.f32 %v26, 0.01
    %v29 = vmul.f32 %v27, 0.01
    %vm30 = vcmp.ge.f32.partialorder %v21, 0.0
    %vm31 = vcmp.ge.f32.partialorder %v22, 0.0
    %v32 = vsel %vm30, %v28, 0.0
    %v33 = vsel %vm31, %v29, 0.0
    %34 = vst [vmem:[#allocation5] sm:$0xff] %v32
    %35 = vst [vmem:[#allocation5 + $0x8] sm:$0xff] %v33
    // Predicated region
    $region10: #{tpu_custom_call.1} parent=1 // pred_check
      _
    $region11: #{tpu_custom_call.1} parent=1 // pred_check_branch
      %37 = sbr.rel (0) target = $region13
    $region12: #{tpu_custom_call.1} parent=1 // pred_region
      %s39 = ssub.s32 256, 256
      %40 = vsyncadd [#allocation4], %s39
      %s42 = sshll.u32 [#allocation5], 4
      %s43 = int_to_ptr.vmem [resolvable:$true] %s42
      %45 = dma.vmem_to_hbm [thread:$0]  %s43, 256, %s1, [#allocation4]
    $region13: #{tpu_custom_call.1} parent=1 // pred_fallthru
      _
    // Predicated region
    $region14: #{tpu_custom_call.1} parent=1 // pred_check
      _
    $region15: #{tpu_custom_call.1} parent=1 // pred_check_branch
      %47 = sbr.rel (0) target = $region17
    $region16: #{tpu_custom_call.1} parent=1 // pred_region
      %48 = dma.done [#allocation4], 256
    $region17: #{tpu_custom_call.1} parent=1 // pred_fallthru
      _
    %49 = vsyncpa [#allocation3], 1
    %50 = vsyncpa [#allocation4], 1

</llo_original>
